<compile_context>
chip_gen: v7x
topology: tpu7x:2x2x1
jax: 0.10.0
libtpu: 0.0.40
codegen_flags: <defaults>
</compile_context>

<pallas_src>
import functools

import jax
import jax.numpy as jnp
from jax.experimental import pallas as pl
from jax.experimental.pallas import tpu as pltpu


def myrnn_kernel(x_ref, h0_ref, wih_t_ref, whh_t_ref, bias_ref,
                 wlin_t_ref, blin_ref, logp_ref, hn_ref):
    T = x_ref.shape[0]

    # Hoisted input projection for ALL timesteps (one M=T matmul) with the
    # combined RNN bias folded in.  Padded lanes of W_ih_T / bias are zero,
    # so padded lanes of xp are zero.
    xp = (jnp.dot(x_ref[...], wih_t_ref[...],
                  preferred_element_type=jnp.float32)
          + bias_ref[...])                                   # (T, Hp)

    w_hh = whh_t_ref[...]                                    # loop-invariant RHS
    h = h0_ref[...]                                          # (1, Hp), lives in vregs

    # Fully unrolled recurrence:  h_t = tanh(xp[t] + h_{t-1} @ W_hh^T)
    # Only the (1,Hp)x(Hp,Hp) matmul + tanh are on the serial chain.
    for t in range(T):
        h = jnp.tanh(xp[t:t + 1, :]
                     + jnp.dot(h, w_hh, preferred_element_type=jnp.float32))

    # single lane-dense store of the final hidden state
    hn_ref[...] = h

    # linear + log-softmax (padded output lanes carry -1e30 bias -> exp == 0)
    logits = (jnp.dot(h, wlin_t_ref[...],
                      preferred_element_type=jnp.float32)
              + blin_ref[...])                               # (1, Op)
    m = jnp.max(logits, axis=-1, keepdims=True)
    z = logits - m
    lse = jnp.log(jnp.sum(jnp.exp(z), axis=-1, keepdims=True))
    logp_ref[...] = z - lse


def _round_up(n, m):
    return ((n + m - 1) // m) * m


def prepare_params(params, lane=128):
    """One-time parameter prep: transpose, fold biases, pad to 128 lanes."""
    f32 = jnp.float32
    H, I = params["W_ih"].shape
    O = params["W_lin"].shape[0]
    Hp = _round_up(H, lane)
    Op = _round_up(O, lane)

    wih_t = jnp.zeros((I, Hp), f32).at[:, :H].set(params["W_ih"].T.astype(f32))
    whh_t = jnp.zeros((Hp, Hp), f32).at[:H, :H].set(params["W_hh"].T.astype(f32))
    bias = jnp.zeros((1, Hp), f32).at[:, :H].set(
        (params["b_ih"] + params["b_hh"]).reshape(1, H).astype(f32))
    wlin_t = jnp.zeros((Hp, Op), f32).at[:H, :O].set(params["W_lin"].T.astype(f32))
    # padded output lanes get a huge negative bias so log-softmax ignores them
    blin = jnp.full((1, Op), -1e30, f32).at[:, :O].set(
        params["b_lin"].reshape(1, O).astype(f32))

    return {
        "W_ih_T": wih_t, "W_hh_T": whh_t, "bias": bias,
        "W_lin_T": wlin_t, "b_lin": blin,
        "I": I, "H": H, "O": O, "Hp": Hp, "Op": Op,
    }


@functools.partial(jax.jit, static_argnames=("H", "O", "Hp", "Op"))
def _myrnn_call(x, h0, wih_t, whh_t, bias, wlin_t, blin, *, H, O, Hp, Op):
    # pad h0 into the lane-padded hidden layout
    h0p = jnp.zeros((1, Hp), jnp.float32).at[:, :H].set(
        h0.reshape(1, H).astype(jnp.float32))

    vmem = pl.BlockSpec(memory_space=pltpu.MemorySpace.VMEM)
    logp_p, hn_p = pl.pallas_call(
        myrnn_kernel,
        out_shape=(jax.ShapeDtypeStruct((1, Op), jnp.float32),
                   jax.ShapeDtypeStruct((1, Hp), jnp.float32)),
        in_specs=[vmem] * 7,
        out_specs=(vmem, vmem),
    )(x.astype(jnp.float32), h0p, wih_t, whh_t, bias, wlin_t, blin)

    return logp_p[:, :O], hn_p[:, :H].reshape(1, 1, H)


def myrnn_forward(x, h0, prep):
    """x: (T, I)  h0: (num_layers=1, 1, H).  Returns (logp (1,O), hn (1,1,H))."""
    return _myrnn_call(x, h0,
                       prep["W_ih_T"], prep["W_hh_T"], prep["bias"],
                       prep["W_lin_T"], prep["b_lin"],
                       H=prep["H"], O=prep["O"], Hp=prep["Hp"], Op=prep["Op"])


def init_params(key, input_size, hidden_size, output_size):
    """Deterministic init mirroring PyTorch's U(-1/sqrt(H), 1/sqrt(H))."""
    ks = jax.random.split(key, 6)
    bound = 1.0 / jnp.sqrt(hidden_size)
    u = lambda k, shape, b: jax.random.uniform(k, shape, jnp.float32, -b, b)
    return {
        "W_ih": u(ks[0], (hidden_size, input_size), bound),
        "W_hh": u(ks[1], (hidden_size, hidden_size), bound),
        "b_ih": u(ks[2], (hidden_size,), bound),
        "b_hh": u(ks[3], (hidden_size,), bound),
        "W_lin": u(ks[4], (output_size, hidden_size), bound),
        "b_lin": u(ks[5], (output_size,), bound),
    }


def myrnn_reference(x, h0, params):
    """Pure-JAX reference of the PyTorch forward (num_layers=1, batch=1)."""
    h = h0.reshape(1, -1)
    for t in range(x.shape[0]):
        x_t = x[t:t + 1]
        h = jnp.tanh(x_t @ params["W_ih"].T + params["b_ih"]
                     + h @ params["W_hh"].T + params["b_hh"])
    logits = h @ params["W_lin"].T + params["b_lin"]
    logp = jax.nn.log_softmax(logits, axis=-1)
    return logp, h.reshape(1, 1, -1)


if __name__ == "__main__":
    # Shapes consistent with the name-classifier use of MyRNN:
    #   input_size ~ one-hot character vocab, hidden_size, output_size = #categories.
    seq_len, input_size, hidden_size, output_size = 8, 57, 32, 18

    key = jax.random.PRNGKey(0)
    kp, kx = jax.random.split(key)
    params = init_params(kp, input_size, hidden_size, output_size)
    prep = prepare_params(params)

    # synthetic "one-hot-ish" input sequence (T, I) and zero initial hidden
    x = jax.random.normal(kx, (seq_len, input_size), jnp.float32)
    h0 = jnp.zeros((1, 1, hidden_size), jnp.float32)   # inithidden()

    logp, hn = myrnn_forward(x, h0, params if False else prep)
    jax.block_until_ready((logp, hn))

    logp_ref, hn_ref = myrnn_reference(x, h0, params)
    assert jnp.allclose(logp, logp_ref, atol=1e-5, rtol=1e-5), "logp mismatch"
    assert jnp.allclose(hn, hn_ref, atol=1e-5, rtol=1e-5), "hn mismatch"
    assert logp.shape == (1, output_size) and hn.shape == (1, 1, hidden_size)

    print("KERNEL_OK")
</pallas_src>

<mosaic_0001>
module attributes {stable_mosaic.version = 11 : i64} {
  func.func @myrnn_kernel(%arg0: memref<8x57xf32, #tpu.memory_space<vmem>>, %arg1: memref<1x128xf32, #tpu.memory_space<vmem>>, %arg2: memref<57x128xf32, #tpu.memory_space<vmem>>, %arg3: memref<128x128xf32, #tpu.memory_space<vmem>>, %arg4: memref<1x128xf32, #tpu.memory_space<vmem>>, %arg5: memref<128x128xf32, #tpu.memory_space<vmem>>, %arg6: memref<1x128xf32, #tpu.memory_space<vmem>>, %arg7: memref<1x128xf32, #tpu.memory_space<vmem>>, %arg8: memref<1x128xf32, #tpu.memory_space<vmem>>) attributes {dimension_semantics = [], scalar_prefetch = 0 : i64, scratch_operands = 0 : i64, tpu.core_type = #tpu.core_type<tc>} {
    %c0 = arith.constant 0 : index
    %c0_0 = arith.constant 0 : index
    %0 = vector.load %arg0[%c0, %c0_0] : memref<8x57xf32, #tpu.memory_space<vmem>>, vector<8x57xf32>
    %c0_1 = arith.constant 0 : index
    %c0_2 = arith.constant 0 : index
    %1 = vector.load %arg2[%c0_1, %c0_2] : memref<57x128xf32, #tpu.memory_space<vmem>>, vector<57x128xf32>
    %cst = arith.constant dense<0.000000e+00> : vector<8x128xf32>
    %2 = tpu.matmul %0, %1, %cst {dimension_numbers = #tpu.dot_dimension_numbers<[1], [0], [0], [1], [0, 0, 1, 1], [], []>} : vector<8x57xf32>, vector<57x128xf32>, vector<8x128xf32> -> vector<8x128xf32>
    %c0_3 = arith.constant 0 : index
    %c0_4 = arith.constant 0 : index
    %3 = vector.load %arg4[%c0_3, %c0_4] : memref<1x128xf32, #tpu.memory_space<vmem>>, vector<1x128xf32>
    %4 = vector.broadcast %3 : vector<1x128xf32> to vector<8x128xf32>
    %5 = arith.addf %2, %4 : vector<8x128xf32>
    %c0_5 = arith.constant 0 : index
    %c0_6 = arith.constant 0 : index
    %6 = vector.load %arg3[%c0_5, %c0_6] : memref<128x128xf32, #tpu.memory_space<vmem>>, vector<128x128xf32>
    %c0_7 = arith.constant 0 : index
    %c0_8 = arith.constant 0 : index
    %7 = vector.load %arg1[%c0_7, %c0_8] : memref<1x128xf32, #tpu.memory_space<vmem>>, vector<1x128xf32>
    %8 = vector.extract_strided_slice %5 {offsets = [0, 0], sizes = [1, 128], strides = [1, 1]} : vector<8x128xf32> to vector<1x128xf32>
    %cst_9 = arith.constant dense<0.000000e+00> : vector<1x128xf32>
    %9 = tpu.matmul %7, %6, %cst_9 {dimension_numbers = #tpu.dot_dimension_numbers<[1], [0], [0], [1], [0, 0, 1, 1], [], []>} : vector<1x128xf32>, vector<128x128xf32>, vector<1x128xf32> -> vector<1x128xf32>
    %10 = arith.addf %8, %9 : vector<1x128xf32>
    %11 = math.tanh %10 : vector<1x128xf32>
    %12 = vector.extract_strided_slice %5 {offsets = [1, 0], sizes = [1, 128], strides = [1, 1]} : vector<8x128xf32> to vector<1x128xf32>
    %cst_10 = arith.constant dense<0.000000e+00> : vector<1x128xf32>
    %13 = tpu.matmul %11, %6, %cst_10 {dimension_numbers = #tpu.dot_dimension_numbers<[1], [0], [0], [1], [0, 0, 1, 1], [], []>} : vector<1x128xf32>, vector<128x128xf32>, vector<1x128xf32> -> vector<1x128xf32>
    %14 = arith.addf %12, %13 : vector<1x128xf32>
    %15 = math.tanh %14 : vector<1x128xf32>
    %16 = vector.extract_strided_slice %5 {offsets = [2, 0], sizes = [1, 128], strides = [1, 1]} : vector<8x128xf32> to vector<1x128xf32>
    %cst_11 = arith.constant dense<0.000000e+00> : vector<1x128xf32>
    %17 = tpu.matmul %15, %6, %cst_11 {dimension_numbers = #tpu.dot_dimension_numbers<[1], [0], [0], [1], [0, 0, 1, 1], [], []>} : vector<1x128xf32>, vector<128x128xf32>, vector<1x128xf32> -> vector<1x128xf32>
    %18 = arith.addf %16, %17 : vector<1x128xf32>
    %19 = math.tanh %18 : vector<1x128xf32>
    %20 = vector.extract_strided_slice %5 {offsets = [3, 0], sizes = [1, 128], strides = [1, 1]} : vector<8x128xf32> to vector<1x128xf32>
    %cst_12 = arith.constant dense<0.000000e+00> : vector<1x128xf32>
    %21 = tpu.matmul %19, %6, %cst_12 {dimension_numbers = #tpu.dot_dimension_numbers<[1], [0], [0], [1], [0, 0, 1, 1], [], []>} : vector<1x128xf32>, vector<128x128xf32>, vector<1x128xf32> -> vector<1x128xf32>
    %22 = arith.addf %20, %21 : vector<1x128xf32>
    %23 = math.tanh %22 : vector<1x128xf32>
    %24 = vector.extract_strided_slice %5 {offsets = [4, 0], sizes = [1, 128], strides = [1, 1]} : vector<8x128xf32> to vector<1x128xf32>
    %cst_13 = arith.constant dense<0.000000e+00> : vector<1x128xf32>
    %25 = tpu.matmul %23, %6, %cst_13 {dimension_numbers = #tpu.dot_dimension_numbers<[1], [0], [0], [1], [0, 0, 1, 1], [], []>} : vector<1x128xf32>, vector<128x128xf32>, vector<1x128xf32> -> vector<1x128xf32>
    %26 = arith.addf %24, %25 : vector<1x128xf32>
    %27 = math.tanh %26 : vector<1x128xf32>
    %28 = vector.extract_strided_slice %5 {offsets = [5, 0], sizes = [1, 128], strides = [1, 1]} : vector<8x128xf32> to vector<1x128xf32>
    %cst_14 = arith.constant dense<0.000000e+00> : vector<1x128xf32>
    %29 = tpu.matmul %27, %6, %cst_14 {dimension_numbers = #tpu.dot_dimension_numbers<[1], [0], [0], [1], [0, 0, 1, 1], [], []>} : vector<1x128xf32>, vector<128x128xf32>, vector<1x128xf32> -> vector<1x128xf32>
    %30 = arith.addf %28, %29 : vector<1x128xf32>
    %31 = math.tanh %30 : vector<1x128xf32>
    %32 = vector.extract_strided_slice %5 {offsets = [6, 0], sizes = [1, 128], strides = [1, 1]} : vector<8x128xf32> to vector<1x128xf32>
    %cst_15 = arith.constant dense<0.000000e+00> : vector<1x128xf32>
    %33 = tpu.matmul %31, %6, %cst_15 {dimension_numbers = #tpu.dot_dimension_numbers<[1], [0], [0], [1], [0, 0, 1, 1], [], []>} : vector<1x128xf32>, vector<128x128xf32>, vector<1x128xf32> -> vector<1x128xf32>
    %34 = arith.addf %32, %33 : vector<1x128xf32>
    %35 = math.tanh %34 : vector<1x128xf32>
    %36 = vector.extract_strided_slice %5 {offsets = [7, 0], sizes = [1, 128], strides = [1, 1]} : vector<8x128xf32> to vector<1x128xf32>
    %cst_16 = arith.constant dense<0.000000e+00> : vector<1x128xf32>
    %37 = tpu.matmul %35, %6, %cst_16 {dimension_numbers = #tpu.dot_dimension_numbers<[1], [0], [0], [1], [0, 0, 1, 1], [], []>} : vector<1x128xf32>, vector<128x128xf32>, vector<1x128xf32> -> vector<1x128xf32>
    %38 = arith.addf %36, %37 : vector<1x128xf32>
    %39 = math.tanh %38 : vector<1x128xf32>
    %c0_17 = arith.constant 0 : index
    %c0_18 = arith.constant 0 : index
    %40 = vector.load %arg8[%c0_17, %c0_18] : memref<1x128xf32, #tpu.memory_space<vmem>>, vector<1x128xf32>
    tpu.vector_store %arg8[%c0_17, %c0_18], %39 {strides = array<i32>} : memref<1x128xf32, #tpu.memory_space<vmem>>, vector<1x128xf32>,
    %c0_19 = arith.constant 0 : index
    %c0_20 = arith.constant 0 : index
    %41 = vector.load %arg5[%c0_19, %c0_20] : memref<128x128xf32, #tpu.memory_space<vmem>>, vector<128x128xf32>
    %cst_21 = arith.constant dense<0.000000e+00> : vector<1x128xf32>
    %42 = tpu.matmul %39, %41, %cst_21 {dimension_numbers = #tpu.dot_dimension_numbers<[1], [0], [0], [1], [0, 0, 1, 1], [], []>} : vector<1x128xf32>, vector<128x128xf32>, vector<1x128xf32> -> vector<1x128xf32>
    %c0_22 = arith.constant 0 : index
    %c0_23 = arith.constant 0 : index
    %43 = vector.load %arg6[%c0_22, %c0_23] : memref<1x128xf32, #tpu.memory_space<vmem>>, vector<1x128xf32>
    %44 = arith.addf %42, %43 : vector<1x128xf32>
    %cst_24 = arith.constant dense<0xFF800000> : vector<1xf32>
    %45 = vector.multi_reduction <maximumf>, %44, %cst_24 [1] : vector<1x128xf32> to vector<1xf32>
    %46 = vector.shape_cast %45 : vector<1xf32> to vector<1x1xf32>
    %47 = vector.broadcast %46 : vector<1x1xf32> to vector<1x128xf32>
    %48 = arith.subf %44, %47 : vector<1x128xf32>
    %49 = math.exp %48 : vector<1x128xf32>
    %cst_25 = arith.constant dense<0.000000e+00> : vector<1xf32>
    %50 = vector.multi_reduction <add>, %49, %cst_25 [1] : vector<1x128xf32> to vector<1xf32>
    %51 = vector.shape_cast %50 : vector<1xf32> to vector<1x1xf32>
    %52 = math.log %51 : vector<1x1xf32>
    %53 = vector.broadcast %52 : vector<1x1xf32> to vector<1x128xf32>
    %54 = arith.subf %48, %53 : vector<1x128xf32>
    %c0_26 = arith.constant 0 : index
    %c0_27 = arith.constant 0 : index
    %55 = vector.load %arg7[%c0_26, %c0_27] : memref<1x128xf32, #tpu.memory_space<vmem>>, vector<1x128xf32>
    tpu.vector_store %arg7[%c0_26, %c0_27], %54 {strides = array<i32>} : memref<1x128xf32, #tpu.memory_space<vmem>>, vector<1x128xf32>,
    return
  }
}

</mosaic_0001>

<llo_original>
// kernel: _myrnn_call.1
$region0: #{_myrnn_call.1}
  #allocation0 [shape = 'u32[]', space=smem, size = 0x4, offset = 0x4, fixed_abs, tag = 'smem constant byte address 0x4 - core index']
  #allocation1 [shape = 'u32[144,128]{1,0:T(1,128)}', space=vmem, size = 0x12000, scoped, tag = 'internal scratch']
  %s0 = inlined_call_operand.vmem [shape: f32[8,57], index: 0, kind: input, shape index: {}]
  %s1 = inlined_call_operand.vmem [shape: f32[1,128], index: 1, kind: input, shape index: {}]
  %s2 = inlined_call_operand.hbm [shape: f32[57,128], index: 2, kind: input, shape index: {}]
  %s3 = inlined_call_operand.hbm [shape: f32[128,128], index: 3, kind: input, shape index: {}]
  %s4 = inlined_call_operand.vmem [shape: f32[1,128], index: 4, kind: input, shape index: {}]
  %s5 = inlined_call_operand.hbm [shape: f32[128,128], index: 5, kind: input, shape index: {}]
  %s6 = inlined_call_operand.vmem [shape: f32[1,128], index: 6, kind: input, shape index: {}]
  %s7 = inlined_call_operand.hbm [shape: f32[1,128], index: 7, kind: output, shape index: {0}]
  %s8 = inlined_call_operand.vmem [shape: f32[1,128], index: 8, kind: output, shape index: {1}]
  %9 = xla_tuple %s7, %s8
  %s10 = sld [smem:[#allocation0]]
  $region58: #{_myrnn_call.1} parent=0
    _
  %s12 = ssub.s32 1, %s10
  %s13 = scalar_select 0, %s12, %s10
  $region1: #{_myrnn_call.1} parent=0
    #allocation2 [shape = 'u8[32768]{0}', space=vmem, size = 0x8000, scoped, tag = 'input window, operand 2, single buffered']
    #allocation3 [shape = 's32[1]{0}', space=sflag, size = 0x4, scoped, tag = 'scoped memory for _myrnn_call.1']
    #allocation4 [shape = 's32[1]{0}', space=sflag, size = 0x4, scoped, tag = 'scoped memory for _myrnn_call.1']
    #allocation5 [shape = 'u8[65536]{0}', space=vmem, size = 0x10000, scoped, tag = 'input window, operand 3, single buffered']
    #allocation6 [shape = 's32[1]{0}', space=sflag, size = 0x4, scoped, tag = 'scoped memory for _myrnn_call.1']
    #allocation7 [shape = 'u8[65536]{0}', space=vmem, size = 0x10000, scoped, tag = 'input window, operand 5, single buffered']
    #allocation8 [shape = 'u8[512]{0}', space=vmem, size = 0x400, scoped, tag = 'output window, operand 0, single buffered']
    %14 = vsyncpa [#allocation3], 0
    %15 = vsyncpa [#allocation6], 0
    %16 = vsyncpa [#allocation4], 0
    // Predicated region
    $region2: #{_myrnn_call.1} parent=1 // pred_check
      _
    $region3: #{_myrnn_call.1} parent=1 // pred_check_branch
      %18 = sbr.rel (0) target = $region5
    $region4: #{_myrnn_call.1} parent=1 // pred_region
      _
    $region5: #{_myrnn_call.1} parent=1 // pred_fallthru
      _
    // Predicated region
    $region6: #{_myrnn_call.1} parent=1 // pred_check
      _
    $region7: #{_myrnn_call.1} parent=1 // pred_check_branch
      %20 = sbr.rel (0) target = $region9
    $region8: #{_myrnn_call.1} parent=1 // pred_region
      _
    $region9: #{_myrnn_call.1} parent=1 // pred_fallthru
      _
    // Predicated region
    $region10: #{_myrnn_call.1} parent=1 // pred_check
      _
    $region11: #{_myrnn_call.1} parent=1 // pred_check_branch
      %22 = sbr.rel (0) target = $region13
    $region12: #{_myrnn_call.1} parent=1 // pred_region
      %s24 = ssub.s32 1024, 1024
      %25 = vsyncadd [#allocation3], %s24
      %s26 = sshll.u32 [#allocation2], 4
      %s27 = int_to_ptr.vmem [resolvable:$true] %s26
      %32 = dma.hbm_to_vmem [thread:$0]  %s2, 1024, %s27, [#allocation3], 128, 128, 8
    $region13: #{_myrnn_call.1} parent=1 // pred_fallthru
      _
    // Predicated region
    $region14: #{_myrnn_call.1} parent=1 // pred_check
      _
    $region15: #{_myrnn_call.1} parent=1 // pred_check_branch
      %34 = sbr.rel (0) target = $region17
    $region16: #{_myrnn_call.1} parent=1 // pred_region
      %s36 = ssub.s32 2048, 2048
      %37 = vsyncadd [#allocation6], %s36
      %s38 = sshll.u32 [#allocation5], 4
      %s39 = int_to_ptr.vmem [resolvable:$true] %s38
      %44 = dma.hbm_to_vmem [thread:$0]  %s3, 2048, %s39, [#allocation6], 128, 128, 8
    $region17: #{_myrnn_call.1} parent=1 // pred_fallthru
      _
    // Predicated region
    $region18: #{_myrnn_call.1} parent=1 // pred_check
      _
    $region19: #{_myrnn_call.1} parent=1 // pred_check_branch
      %46 = sbr.rel (0) target = $region21
    $region20: #{_myrnn_call.1} parent=1 // pred_region
      _
    $region21: #{_myrnn_call.1} parent=1 // pred_fallthru
      _
    // Predicated region
    $region22: #{_myrnn_call.1} parent=1 // pred_check
      _
    $region23: #{_myrnn_call.1} parent=1 // pred_check_branch
      %48 = sbr.rel (0) target = $region25
    $region24: #{_myrnn_call.1} parent=1 // pred_region
      %s50 = ssub.s32 2048, 2048
      %51 = vsyncadd [#allocation6], %s50
      %s52 = sshll.u32 [#allocation7], 4
      %s53 = int_to_ptr.vmem [resolvable:$true] %s52
      %58 = dma.hbm_to_vmem [thread:$0]  %s5, 2048, %s53, [#allocation6], 128, 128, 8
    $region25: #{_myrnn_call.1} parent=1 // pred_fallthru
      _
    // Predicated region
    $region26: #{_myrnn_call.1} parent=1 // pred_check
      _
    $region27: #{_myrnn_call.1} parent=1 // pred_check_branch
      %60 = sbr.rel (0) target = $region29
    $region28: #{_myrnn_call.1} parent=1 // pred_region
      _
    $region29: #{_myrnn_call.1} parent=1 // pred_fallthru
      _
    // Predicated region
    $region30: #{_myrnn_call.1} parent=1 // pred_check
      _
    $region31: #{_myrnn_call.1} parent=1 // pred_check_branch
      %62 = sbr.rel (0) target = $region33
    $region32: #{_myrnn_call.1} parent=1 // pred_region
      %63 = dma.done [#allocation3], 1024
    $region33: #{_myrnn_call.1} parent=1 // pred_fallthru
      _
    // Predicated region
    $region34: #{_myrnn_call.1} parent=1 // pred_check
      _
    $region35: #{_myrnn_call.1} parent=1 // pred_check_branch
      %65 = sbr.rel (0) target = $region37
    $region36: #{_myrnn_call.1} parent=1 // pred_region
      %66 = dma.done [#allocation6], 2048
    $region37: #{_myrnn_call.1} parent=1 // pred_fallthru
      _
    // Predicated region
    $region38: #{_myrnn_call.1} parent=1 // pred_check
      _
    $region39: #{_myrnn_call.1} parent=1 // pred_check_branch
      %68 = sbr.rel (0) target = $region41
    $region40: #{_myrnn_call.1} parent=1 // pred_region
      %69 = dma.done [#allocation6], 2048
    $region41: #{_myrnn_call.1} parent=1 // pred_fallthru
      _
    %v70 = vld [vmem:[%s0] sm:$0xff]
    %v71 = vld [vmem:[#allocation2] sm:$0xff]
    %v72 = vld [vmem:[#allocation2 + $0x8] sm:$0xff]
    %v73 = vld [vmem:[#allocation2 + $0x10] sm:$0xff]
    %v74 = vld [vmem:[#allocation2 + $0x18] sm:$0xff]
    %v75 = vld [vmem:[#allocation2 + $0x20] sm:$0xff]
    %v76 = vld [vmem:[#allocation2 + $0x28] sm:$0xff]
    %v77 = vld [vmem:[#allocation2 + $0x30] sm:$0xff]
    %v78 = vld [vmem:[#allocation2 + $0x38] sm:$0x1]
    %v79 = vld [vmem:[%s4] sm:$0x1]
    %v81 = vlaneseq
    %v82 = vshrl.u32 %v81, 7
    %v83 = vsub.s32 0, %v82
    %v84 = vrot.slane %v79, %v83
    %vm86 = vcmask 465920
    %v88 = vsel %vm86, %v70, 0
    %vm90 = vcmask 1040384
    %v92 = vsel %vm90, %v78, 0
    %94 = vmatprep.subr.mxu0 0.0
    %95 = vmatpush1.msra.mxu0 %v71
    %96 = vmatprep.subr.mxu0 0.0
    %97 = vmatpush1.msra.mxu0 %v72
    %98 = vmatprep.subr.mxu0 0.0
    %99 = vmatpush1.msra.mxu0 %v73
    %100 = vmatprep.subr.mxu0 0.0
    %101 = vmatpush1.msra.mxu0 %v74
    %102 = vmatprep.subr.mxu0 0.0
    %103 = vmatpush1.msra.mxu0 %v75
    %104 = vmatprep.subr.mxu0 0.0
    %105 = vmatpush1.msra.mxu0 %v76
    %106 = vmatprep.subr.mxu0 0.0
    %107 = vmatpush1.msra.mxu0 %v77
    %108 = vmatprep.subr.mxu0 0.0
    %109 = vmatpush1.msra.mxu0 %v92
    %110 = vmatprep.subr.mxu0 0.0
    %111 = vmatpush1.msra.mxu0 0.0
    %112 = vmatprep.subr.mxu0 0.0
    %113 = vmatpush1.msra.mxu0 0.0
    %114 = vmatprep.subr.mxu0 0.0
    %115 = vmatpush1.msra.mxu0 0.0
    %116 = vmatprep.subr.mxu0 0.0
    %117 = vmatpush1.msra.mxu0 0.0
    %118 = vmatprep.subr.mxu0 0.0
    %119 = vmatpush1.msra.mxu0 0.0
    %120 = vmatprep.subr.mxu0 0.0
    %121 = vmatpush1.msra.mxu0 0.0
    %122 = vmatprep.subr.mxu0 0.0
    %123 = vmatpush1.msra.mxu0 0.0
    %124 = vmatprep.subr.mxu0 0.0
    %125 = vmatpush1.msra.mxu0 0.0
    %126 = vmatprep.subr.mxu0 0.0
    %127 = vmatpush1.msra.mxu0 0.0
    %128 = vmatprep.subr.mxu0 0.0
    %129 = vmatpush1.msra.mxu0 0.0
    %130 = vmatprep.subr.mxu0 0.0
    %131 = vmatpush1.msra.mxu0 0.0
    %132 = vmatprep.subr.mxu0 0.0
    %133 = vmatpush1.msra.mxu0 0.0
    %134 = vmatprep.subr.mxu0 0.0
    %135 = vmatpush1.msra.mxu0 0.0
    %136 = vmatprep.subr.mxu0 0.0
    %137 = vmatpush1.msra.mxu0 0.0
    %138 = vmatprep.subr.mxu0 0.0
    %139 = vmatpush1.msra.mxu0 0.0
    %140 = vmatprep.subr.mxu0 0.0
    %141 = vmatpush1.msra.mxu0 0.0
    %142 = vmatprep.subr.mxu0 0.0
    %143 = vmatpush1.msra.mxu0 0.0
    %144 = vmatprep.subr.mxu0 0.0
    %145 = vmatpush1.msra.mxu0 0.0
    %146 = vmatprep.subr.mxu0 0.0
    %147 = vmatpush1.msra.mxu0 0.0
    %148 = vmatprep.subr.mxu0 0.0
    %149 = vmatpush1.msra.mxu0 0.0
    %150 = vmatprep.subr.mxu0 0.0
    %151 = vmatpush1.msra.mxu0 0.0
    %152 = vmatprep.subr.mxu0 0.0
    %153 = vmatpush1.msra.mxu0 0.0
    %154 = vmatprep.subr.mxu0 0.0
    %155 = vmatpush1.msra.mxu0 0.0
    %156 = vmatprep.subr.mxu0 0.0
    %157 = vmatpush1.msra.mxu0 0.0
    %158 = vmatprep.mubr.f32.mxu0 0.0
    %159 = vmatmul.mubr.f32.gmra.mrb[0].mxu0 %v88
    %v160 = vpop.f32.mrb[0].mxu0
    %v161 = vadd.f32 %v84, %v160
    %v162 = vpop.f32.mrb[0].mxu0
    %163 = vdwg.mxu0
    %v164 = vld [vmem:[#allocation5] sm:$0xff]
    %v165 = vld [vmem:[#allocation5 + $0x8] sm:$0xff]
    %v166 = vld [vmem:[#allocation5 + $0x10] sm:$0xff]
    %v167 = vld [vmem:[#allocation5 + $0x18] sm:$0xff]
    %v168 = vld [vmem:[#allocation5 + $0x20] sm:$0xff]
    %v169 = vld [vmem:[#allocation5 + $0x28] sm:$0xff]
    %v170 = vld [vmem:[#allocation5 + $0x30] sm:$0xff]
    %v171 = vld [vmem:[#allocation5 + $0x38] sm:$0xff]
    %v172 = vld [vmem:[#allocation5 + $0x40] sm:$0xff]
    %v173 = vld [vmem:[#allocation5 + $0x48] sm:$0xff]
    %v174 = vld [vmem:[#allocation5 + $0x50] sm:$0xff]
    %v175 = vld [vmem:[#allocation5 + $0x58] sm:$0xff]
    %v176 = vld [vmem:[#allocation5 + $0x60] sm:$0xff]
    %v177 = vld [vmem:[#allocation5 + $0x68] sm:$0xff]
    %v178 = vld [vmem:[#allocation5 + $0x70] sm:$0xff]
    %v179 = vld [vmem:[#allocation5 + $0x78] sm:$0xff]
    %v180 = vld [vmem:[%s1] sm:$0x1]
    %181 = vmatprep.subr.mxu0 0.0
    %182 = vmatpush1.msra.mxu0 %v164
    %183 = vmatprep.subr.mxu0 0.0
    %184 = vmatpush1.msra.mxu0 %v165
    %185 = vmatprep.subr.mxu0 0.0
    %186 = vmatpush1.msra.mxu0 %v166
    %187 = vmatprep.subr.mxu0 0.0
    %188 = vmatpush1.msra.mxu0 %v167
    %189 = vmatprep.subr.mxu0 0.0
    %190 = vmatpush1.msra.mxu0 %v168
    %191 = vmatprep.subr.mxu0 0.0
    %192 = vmatpush1.msra.mxu0 %v169
    %193 = vmatprep.subr.mxu0 0.0
    %194 = vmatpush1.msra.mxu0 %v170
    %195 = vmatprep.subr.mxu0 0.0
    %196 = vmatpush1.msra.mxu0 %v171
    %197 = vmatprep.subr.mxu0 0.0
    %198 = vmatpush1.msra.mxu0 %v172
    %199 = vmatprep.subr.mxu0 0.0
    %200 = vmatpush1.msra.mxu0 %v173
    %201 = vmatprep.subr.mxu0 0.0
    %202 = vmatpush1.msra.mxu0 %v174
    %203 = vmatprep.subr.mxu0 0.0
    %204 = vmatpush1.msra.mxu0 %v175
    %205 = vmatprep.subr.mxu0 0.0
    %206 = vmatpush1.msra.mxu0 %v176
    %207 = vmatprep.subr.mxu0 0.0
    %208 = vmatpush1.msra.mxu0 %v177
    %209 = vmatprep.subr.mxu0 0.0
    %210 = vmatpush1.msra.mxu0 %v178
    %211 = vmatprep.subr.mxu0 0.0
    %212 = vmatpush1.msra.mxu0 %v179
    %213 = vmatprep.subr.mxu0 0.0
    %214 = vmatpush1.msra.mxu0 0.0
    %215 = vmatprep.subr.mxu0 0.0
    %216 = vmatpush1.msra.mxu0 0.0
    %217 = vmatprep.subr.mxu0 0.0
    %218 = vmatpush1.msra.mxu0 0.0
    %219 = vmatprep.subr.mxu0 0.0
    %220 = vmatpush1.msra.mxu0 0.0
    %221 = vmatprep.subr.mxu0 0.0
    %222 = vmatpush1.msra.mxu0 0.0
    %223 = vmatprep.subr.mxu0 0.0
    %224 = vmatpush1.msra.mxu0 0.0
    %225 = vmatprep.subr.mxu0 0.0
    %226 = vmatpush1.msra.mxu0 0.0
    %227 = vmatprep.subr.mxu0 0.0
    %228 = vmatpush1.msra.mxu0 0.0
    %229 = vmatprep.subr.mxu0 0.0
    %230 = vmatpush1.msra.mxu0 0.0
    %231 = vmatprep.subr.mxu0 0.0
    %232 = vmatpush1.msra.mxu0 0.0
    %233 = vmatprep.subr.mxu0 0.0
    %234 = vmatpush1.msra.mxu0 0.0
    %235 = vmatprep.subr.mxu0 0.0
    %236 = vmatpush1.msra.mxu0 0.0
    %237 = vmatprep.subr.mxu0 0.0
    %238 = vmatpush1.msra.mxu0 0.0
    %239 = vmatprep.subr.mxu0 0.0
    %240 = vmatpush1.msra.mxu0 0.0
    %241 = vmatprep.subr.mxu0 0.0
    %242 = vmatpush1.msra.mxu0 0.0
    %243 = vmatprep.subr.mxu0 0.0
    %244 = vmatpush1.msra.mxu0 0.0
    %245 = vmatprep.mubr.f32.mxu0 0.0
    %246 = vmatmul.mubr.f32.gmra.mrb[0].mxu0 %v180
    %v247 = vpop.f32.mrb[0].mxu0
    %v248 = vadd.f32 0.0, %v247
    %v249 = vpop.f32.mrb[0].mxu0
    %250 = vdwg.mxu0
    %v251 = vadd.f32 %v161, %v248
    %v252 = vtanh.pop %v251
    %253 = vmatprep.subr.mxu0 0.0
    %254 = vmatpush1.msra.mxu0 %v164
    %255 = vmatprep.subr.mxu0 0.0
    %256 = vmatpush1.msra.mxu0 %v165
    %257 = vmatprep.subr.mxu0 0.0
    %258 = vmatpush1.msra.mxu0 %v166
    %259 = vmatprep.subr.mxu0 0.0
    %260 = vmatpush1.msra.mxu0 %v167
    %261 = vmatprep.subr.mxu0 0.0
    %262 = vmatpush1.msra.mxu0 %v168
    %263 = vmatprep.subr.mxu0 0.0
    %264 = vmatpush1.msra.mxu0 %v169
    %265 = vmatprep.subr.mxu0 0.0
    %266 = vmatpush1.msra.mxu0 %v170
    %267 = vmatprep.subr.mxu0 0.0
    %268 = vmatpush1.msra.mxu0 %v171
    %269 = vmatprep.subr.mxu0 0.0
    %270 = vmatpush1.msra.mxu0 %v172
    %271 = vmatprep.subr.mxu0 0.0
    %272 = vmatpush1.msra.mxu0 %v173
    %273 = vmatprep.subr.mxu0 0.0
    %274 = vmatpush1.msra.mxu0 %v174
    %275 = vmatprep.subr.mxu0 0.0
    %276 = vmatpush1.msra.mxu0 %v175
    %277 = vmatprep.subr.mxu0 0.0
    %278 = vmatpush1.msra.mxu0 %v176
    %279 = vmatprep.subr.mxu0 0.0
    %280 = vmatpush1.msra.mxu0 %v177
    %281 = vmatprep.subr.mxu0 0.0
    %282 = vmatpush1.msra.mxu0 %v178
    %283 = vmatprep.subr.mxu0 0.0
    %284 = vmatpush1.msra.mxu0 %v179
    %285 = vmatprep.subr.mxu0 0.0
    %286 = vmatpush1.msra.mxu0 0.0
    %287 = vmatprep.subr.mxu0 0.0
    %288 = vmatpush1.msra.mxu0 0.0
    %289 = vmatprep.subr.mxu0 0.0
    %290 = vmatpush1.msra.mxu0 0.0
    %291 = vmatprep.subr.mxu0 0.0
    %292 = vmatpush1.msra.mxu0 0.0
    %293 = vmatprep.subr.mxu0 0.0
    %294 = vmatpush1.msra.mxu0 0.0
    %295 = vmatprep.subr.mxu0 0.0
    %296 = vmatpush1.msra.mxu0 0.0
    %297 = vmatprep.subr.mxu0 0.0
    %298 = vmatpush1.msra.mxu0 0.0
    %299 = vmatprep.subr.mxu0 0.0
    %300 = vmatpush1.msra.mxu0 0.0
    %301 = vmatprep.subr.mxu0 0.0
    %302 = vmatpush1.msra.mxu0 0.0
    %303 = vmatprep.subr.mxu0 0.0
    %304 = vmatpush1.msra.mxu0 0.0
    %305 = vmatprep.subr.mxu0 0.0
    %306 = vmatpush1.msra.mxu0 0.0
    %307 = vmatprep.subr.mxu0 0.0
    %308 = vmatpush1.msra.mxu0 0.0
    %309 = vmatprep.subr.mxu0 0.0
    %310 = vmatpush1.msra.mxu0 0.0
    %311 = vmatprep.subr.mxu0 0.0
    %312 = vmatpush1.msra.mxu0 0.0
    %313 = vmatprep.subr.mxu0 0.0
    %314 = vmatpush1.msra.mxu0 0.0
    %315 = vmatprep.subr.mxu0 0.0
    %316 = vmatpush1.msra.mxu0 0.0
    %317 = vmatprep.mubr.f32.mxu0 0.0
    %318 = vmatmul.mubr.f32.gmra.mrb[0].mxu0 %v252
    %v319 = vpop.f32.mrb[0].mxu0
    %v320 = vadd.f32 0.0, %v319
    %v321 = vpop.f32.mrb[0].mxu0
    %322 = vdwg.mxu0
    %v324 = vrot.slane %v320, 7
    %v326 = vadd.f32 %v161, %v324
    %v327 = vtanh.pop %v326
    %v329 = vrot.slane %v327, 1
    %331 = vmatprep.subr.mxu0 0.0
    %332 = vmatpush1.msra.mxu0 %v164
    %333 = vmatprep.subr.mxu0 0.0
    %334 = vmatpush1.msra.mxu0 %v165
    %335 = vmatprep.subr.mxu0 0.0
    %336 = vmatpush1.msra.mxu0 %v166
    %337 = vmatprep.subr.mxu0 0.0
    %338 = vmatpush1.msra.mxu0 %v167
    %339 = vmatprep.subr.mxu0 0.0
    %340 = vmatpush1.msra.mxu0 %v168
    %341 = vmatprep.subr.mxu0 0.0
    %342 = vmatpush1.msra.mxu0 %v169
    %343 = vmatprep.subr.mxu0 0.0
    %344 = vmatpush1.msra.mxu0 %v170
    %345 = vmatprep.subr.mxu0 0.0
    %346 = vmatpush1.msra.mxu0 %v171
    %347 = vmatprep.subr.mxu0 0.0
    %348 = vmatpush1.msra.mxu0 %v172
    %349 = vmatprep.subr.mxu0 0.0
    %350 = vmatpush1.msra.mxu0 %v173
    %351 = vmatprep.subr.mxu0 0.0
    %352 = vmatpush1.msra.mxu0 %v174
    %353 = vmatprep.subr.mxu0 0.0
    %354 = vmatpush1.msra.mxu0 %v175
    %355 = vmatprep.subr.mxu0 0.0
    %356 = vmatpush1.msra.mxu0 %v176
    %357 = vmatprep.subr.mxu0 0.0
    %358 = vmatpush1.msra.mxu0 %v177
    %359 = vmatprep.subr.mxu0 0.0
    %360 = vmatpush1.msra.mxu0 %v178
    %361 = vmatprep.subr.mxu0 0.0
    %362 = vmatpush1.msra.mxu0 %v179
    %363 = vmatprep.subr.mxu0 0.0
    %364 = vmatpush1.msra.mxu0 0.0
    %365 = vmatprep.subr.mxu0 0.0
    %366 = vmatpush1.msra.mxu0 0.0
    %367 = vmatprep.subr.mxu0 0.0
    %368 = vmatpush1.msra.mxu0 0.0
    %369 = vmatprep.subr.mxu0 0.0
    %370 = vmatpush1.msra.mxu0 0.0
    %371 = vmatprep.subr.mxu0 0.0
    %372 = vmatpush1.msra.mxu0 0.0
    %373 = vmatprep.subr.mxu0 0.0
    %374 = vmatpush1.msra.mxu0 0.0
    %375 = vmatprep.subr.mxu0 0.0
    %376 = vmatpush1.msra.mxu0 0.0
    %377 = vmatprep.subr.mxu0 0.0
    %378 = vmatpush1.msra.mxu0 0.0
    %379 = vmatprep.subr.mxu0 0.0
    %380 = vmatpush1.msra.mxu0 0.0
    %381 = vmatprep.subr.mxu0 0.0
    %382 = vmatpush1.msra.mxu0 0.0
    %383 = vmatprep.subr.mxu0 0.0
    %384 = vmatpush1.msra.mxu0 0.0
    %385 = vmatprep.subr.mxu0 0.0
    %386 = vmatpush1.msra.mxu0 0.0
    %387 = vmatprep.subr.mxu0 0.0
    %388 = vmatpush1.msra.mxu0 0.0
    %389 = vmatprep.subr.mxu0 0.0
    %390 = vmatpush1.msra.mxu0 0.0
    %391 = vmatprep.subr.mxu0 0.0
    %392 = vmatpush1.msra.mxu0 0.0
    %393 = vmatprep.subr.mxu0 0.0
    %394 = vmatpush1.msra.mxu0 0.0
    %395 = vmatprep.mubr.f32.mxu0 0.0
    %396 = vmatmul.mubr.f32.gmra.mrb[0].mxu0 %v329
    %v397 = vpop.f32.mrb[0].mxu0
    %v398 = vadd.f32 0.0, %v397
    %v399 = vpop.f32.mrb[0].mxu0
    %400 = vdwg.mxu0
    %v402 = vrot.slane %v398, 6
    %v404 = vadd.f32 %v161, %v402
    %v405 = vtanh.pop %v404
    %v407 = vrot.slane %v405, 2
    %409 = vmatprep.subr.mxu0 0.0
    %410 = vmatpush1.msra.mxu0 %v164
    %411 = vmatprep.subr.mxu0 0.0
    %412 = vmatpush1.msra.mxu0 %v165
    %413 = vmatprep.subr.mxu0 0.0
    %414 = vmatpush1.msra.mxu0 %v166
    %415 = vmatprep.subr.mxu0 0.0
    %416 = vmatpush1.msra.mxu0 %v167
    %417 = vmatprep.subr.mxu0 0.0
    %418 = vmatpush1.msra.mxu0 %v168
    %419 = vmatprep.subr.mxu0 0.0
    %420 = vmatpush1.msra.mxu0 %v169
    %421 = vmatprep.subr.mxu0 0.0
    %422 = vmatpush1.msra.mxu0 %v170
    %423 = vmatprep.subr.mxu0 0.0
    %424 = vmatpush1.msra.mxu0 %v171
    %425 = vmatprep.subr.mxu0 0.0
    %426 = vmatpush1.msra.mxu0 %v172
    %427 = vmatprep.subr.mxu0 0.0
    %428 = vmatpush1.msra.mxu0 %v173
    %429 = vmatprep.subr.mxu0 0.0
    %430 = vmatpush1.msra.mxu0 %v174
    %431 = vmatprep.subr.mxu0 0.0
    %432 = vmatpush1.msra.mxu0 %v175
    %433 = vmatprep.subr.mxu0 0.0
    %434 = vmatpush1.msra.mxu0 %v176
    %435 = vmatprep.subr.mxu0 0.0
    %436 = vmatpush1.msra.mxu0 %v177
    %437 = vmatprep.subr.mxu0 0.0
    %438 = vmatpush1.msra.mxu0 %v178
    %439 = vmatprep.subr.mxu0 0.0
    %440 = vmatpush1.msra.mxu0 %v179
    %441 = vmatprep.subr.mxu0 0.0
    %442 = vmatpush1.msra.mxu0 0.0
    %443 = vmatprep.subr.mxu0 0.0
    %444 = vmatpush1.msra.mxu0 0.0
    %445 = vmatprep.subr.mxu0 0.0
    %446 = vmatpush1.msra.mxu0 0.0
    %447 = vmatprep.subr.mxu0 0.0
    %448 = vmatpush1.msra.mxu0 0.0
    %449 = vmatprep.subr.mxu0 0.0
    %450 = vmatpush1.msra.mxu0 0.0
    %451 = vmatprep.subr.mxu0 0.0
    %452 = vmatpush1.msra.mxu0 0.0
    %453 = vmatprep.subr.mxu0 0.0
    %454 = vmatpush1.msra.mxu0 0.0
    %455 = vmatprep.subr.mxu0 0.0
    %456 = vmatpush1.msra.mxu0 0.0
    %457 = vmatprep.subr.mxu0 0.0
    %458 = vmatpush1.msra.mxu0 0.0
    %459 = vmatprep.subr.mxu0 0.0
    %460 = vmatpush1.msra.mxu0 0.0
    %461 = vmatprep.subr.mxu0 0.0
    %462 = vmatpush1.msra.mxu0 0.0
    %463 = vmatprep.subr.mxu0 0.0
    %464 = vmatpush1.msra.mxu0 0.0
    %465 = vmatprep.subr.mxu0 0.0
    %466 = vmatpush1.msra.mxu0 0.0
    %467 = vmatprep.subr.mxu0 0.0
    %468 = vmatpush1.msra.mxu0 0.0
    %469 = vmatprep.subr.mxu0 0.0
    %470 = vmatpush1.msra.mxu0 0.0
    %471 = vmatprep.subr.mxu0 0.0
    %472 = vmatpush1.msra.mxu0 0.0
    %473 = vmatprep.mubr.f32.mxu0 0.0
    %474 = vmatmul.mubr.f32.gmra.mrb[0].mxu0 %v407
    %v475 = vpop.f32.mrb[0].mxu0
    %v476 = vadd.f32 0.0, %v475
    %v477 = vpop.f32.mrb[0].mxu0
    %478 = vdwg.mxu0
    %v480 = vrot.slane %v476, 5
    %v482 = vadd.f32 %v161, %v480
    %v483 = vtanh.pop %v482
    %v485 = vrot.slane %v483, 3
    %487 = vmatprep.subr.mxu0 0.0
    %488 = vmatpush1.msra.mxu0 %v164
    %489 = vmatprep.subr.mxu0 0.0
    %490 = vmatpush1.msra.mxu0 %v165
    %491 = vmatprep.subr.mxu0 0.0
    %492 = vmatpush1.msra.mxu0 %v166
    %493 = vmatprep.subr.mxu0 0.0
    %494 = vmatpush1.msra.mxu0 %v167
    %495 = vmatprep.subr.mxu0 0.0
    %496 = vmatpush1.msra.mxu0 %v168
    %497 = vmatprep.subr.mxu0 0.0
    %498 = vmatpush1.msra.mxu0 %v169
    %499 = vmatprep.subr.mxu0 0.0
    %500 = vmatpush1.msra.mxu0 %v170
    %501 = vmatprep.subr.mxu0 0.0
    %502 = vmatpush1.msra.mxu0 %v171
    %503 = vmatprep.subr.mxu0 0.0
    %504 = vmatpush1.msra.mxu0 %v172
    %505 = vmatprep.subr.mxu0 0.0
    %506 = vmatpush1.msra.mxu0 %v173
    %507 = vmatprep.subr.mxu0 0.0
    %508 = vmatpush1.msra.mxu0 %v174
    %509 = vmatprep.subr.mxu0 0.0
    %510 = vmatpush1.msra.mxu0 %v175
    %511 = vmatprep.subr.mxu0 0.0
    %512 = vmatpush1.msra.mxu0 %v176
    %513 = vmatprep.subr.mxu0 0.0
    %514 = vmatpush1.msra.mxu0 %v177
    %515 = vmatprep.subr.mxu0 0.0
    %516 = vmatpush1.msra.mxu0 %v178
    %517 = vmatprep.subr.mxu0 0.0
    %518 = vmatpush1.msra.mxu0 %v179
    %519 = vmatprep.subr.mxu0 0.0
    %520 = vmatpush1.msra.mxu0 0.0
    %521 = vmatprep.subr.mxu0 0.0
    %522 = vmatpush1.msra.mxu0 0.0
    %523 = vmatprep.subr.mxu0 0.0
    %524 = vmatpush1.msra.mxu0 0.0
    %525 = vmatprep.subr.mxu0 0.0
    %526 = vmatpush1.msra.mxu0 0.0
    %527 = vmatprep.subr.mxu0 0.0
    %528 = vmatpush1.msra.mxu0 0.0
    %529 = vmatprep.subr.mxu0 0.0
    %530 = vmatpush1.msra.mxu0 0.0
    %531 = vmatprep.subr.mxu0 0.0
    %532 = vmatpush1.msra.mxu0 0.0
    %533 = vmatprep.subr.mxu0 0.0
    %534 = vmatpush1.msra.mxu0 0.0
    %535 = vmatprep.subr.mxu0 0.0
    %536 = vmatpush1.msra.mxu0 0.0
    %537 = vmatprep.subr.mxu0 0.0
    %538 = vmatpush1.msra.mxu0 0.0
    %539 = vmatprep.subr.mxu0 0.0
    %540 = vmatpush1.msra.mxu0 0.0
    %541 = vmatprep.subr.mxu0 0.0
    %542 = vmatpush1.msra.mxu0 0.0
    %543 = vmatprep.subr.mxu0 0.0
    %544 = vmatpush1.msra.mxu0 0.0
    %545 = vmatprep.subr.mxu0 0.0
    %546 = vmatpush1.msra.mxu0 0.0
    %547 = vmatprep.subr.mxu0 0.0
    %548 = vmatpush1.msra.mxu0 0.0
    %549 = vmatprep.subr.mxu0 0.0
    %550 = vmatpush1.msra.mxu0 0.0
    %551 = vmatprep.mubr.f32.mxu0 0.0
    %552 = vmatmul.mubr.f32.gmra.mrb[0].mxu0 %v485
    %v553 = vpop.f32.mrb[0].mxu0
    %v554 = vadd.f32 0.0, %v553
    %v555 = vpop.f32.mrb[0].mxu0
    %556 = vdwg.mxu0
    %v558 = vrot.slane %v554, 4
    %v560 = vadd.f32 %v161, %v558
    %v561 = vtanh.pop %v560
    %v563 = vrot.slane %v561, 4
    %565 = vmatprep.subr.mxu0 0.0
    %566 = vmatpush1.msra.mxu0 %v164
    %567 = vmatprep.subr.mxu0 0.0
    %568 = vmatpush1.msra.mxu0 %v165
    %569 = vmatprep.subr.mxu0 0.0
    %570 = vmatpush1.msra.mxu0 %v166
    %571 = vmatprep.subr.mxu0 0.0
    %572 = vmatpush1.msra.mxu0 %v167
    %573 = vmatprep.subr.mxu0 0.0
    %574 = vmatpush1.msra.mxu0 %v168
    %575 = vmatprep.subr.mxu0 0.0
    %576 = vmatpush1.msra.mxu0 %v169
    %577 = vmatprep.subr.mxu0 0.0
    %578 = vmatpush1.msra.mxu0 %v170
    %579 = vmatprep.subr.mxu0 0.0
    %580 = vmatpush1.msra.mxu0 %v171
    %581 = vmatprep.subr.mxu0 0.0
    %582 = vmatpush1.msra.mxu0 %v172
    %583 = vmatprep.subr.mxu0 0.0
    %584 = vmatpush1.msra.mxu0 %v173
    %585 = vmatprep.subr.mxu0 0.0
    %586 = vmatpush1.msra.mxu0 %v174
    %587 = vmatprep.subr.mxu0 0.0
    %588 = vmatpush1.msra.mxu0 %v175
    %589 = vmatprep.subr.mxu0 0.0
    %590 = vmatpush1.msra.mxu0 %v176
    %591 = vmatprep.subr.mxu0 0.0
    %592 = vmatpush1.msra.mxu0 %v177
    %593 = vmatprep.subr.mxu0 0.0
    %594 = vmatpush1.msra.mxu0 %v178
    %595 = vmatprep.subr.mxu0 0.0
    %596 = vmatpush1.msra.mxu0 %v179
    %597 = vmatprep.subr.mxu0 0.0
    %598 = vmatpush1.msra.mxu0 0.0
    %599 = vmatprep.subr.mxu0 0.0
    %600 = vmatpush1.msra.mxu0 0.0
    %601 = vmatprep.subr.mxu0 0.0
    %602 = vmatpush1.msra.mxu0 0.0
    %603 = vmatprep.subr.mxu0 0.0
    %604 = vmatpush1.msra.mxu0 0.0
    %605 = vmatprep.subr.mxu0 0.0
    %606 = vmatpush1.msra.mxu0 0.0
    %607 = vmatprep.subr.mxu0 0.0
    %608 = vmatpush1.msra.mxu0 0.0
    %609 = vmatprep.subr.mxu0 0.0
    %610 = vmatpush1.msra.mxu0 0.0
    %611 = vmatprep.subr.mxu0 0.0
    %612 = vmatpush1.msra.mxu0 0.0
    %613 = vmatprep.subr.mxu0 0.0
    %614 = vmatpush1.msra.mxu0 0.0
    %615 = vmatprep.subr.mxu0 0.0
    %616 = vmatpush1.msra.mxu0 0.0
    %617 = vmatprep.subr.mxu0 0.0
    %618 = vmatpush1.msra.mxu0 0.0
    %619 = vmatprep.subr.mxu0 0.0
    %620 = vmatpush1.msra.mxu0 0.0
    %621 = vmatprep.subr.mxu0 0.0
    %622 = vmatpush1.msra.mxu0 0.0
    %623 = vmatprep.subr.mxu0 0.0
    %624 = vmatpush1.msra.mxu0 0.0
    %625 = vmatprep.subr.mxu0 0.0
    %626 = vmatpush1.msra.mxu0 0.0
    %627 = vmatprep.subr.mxu0 0.0
    %628 = vmatpush1.msra.mxu0 0.0
    %629 = vmatprep.mubr.f32.mxu0 0.0
    %630 = vmatmul.mubr.f32.gmra.mrb[0].mxu0 %v563
    %v631 = vpop.f32.mrb[0].mxu0
    %v632 = vadd.f32 0.0, %v631
    %v633 = vpop.f32.mrb[0].mxu0
    %634 = vdwg.mxu0
    %v636 = vrot.slane %v632, 3
    %v638 = vadd.f32 %v161, %v636
    %v639 = vtanh.pop %v638
    %v641 = vrot.slane %v639, 5
    %643 = vmatprep.subr.mxu0 0.0
    %644 = vmatpush1.msra.mxu0 %v164
    %645 = vmatprep.subr.mxu0 0.0
    %646 = vmatpush1.msra.mxu0 %v165
    %647 = vmatprep.subr.mxu0 0.0
    %648 = vmatpush1.msra.mxu0 %v166
    %649 = vmatprep.subr.mxu0 0.0
    %650 = vmatpush1.msra.mxu0 %v167
    %651 = vmatprep.subr.mxu0 0.0
    %652 = vmatpush1.msra.mxu0 %v168
    %653 = vmatprep.subr.mxu0 0.0
    %654 = vmatpush1.msra.mxu0 %v169
    %655 = vmatprep.subr.mxu0 0.0
    %656 = vmatpush1.msra.mxu0 %v170
    %657 = vmatprep.subr.mxu0 0.0
    %658 = vmatpush1.msra.mxu0 %v171
    %659 = vmatprep.subr.mxu0 0.0
    %660 = vmatpush1.msra.mxu0 %v172
    %661 = vmatprep.subr.mxu0 0.0
    %662 = vmatpush1.msra.mxu0 %v173
    %663 = vmatprep.subr.mxu0 0.0
    %664 = vmatpush1.msra.mxu0 %v174
    %665 = vmatprep.subr.mxu0 0.0
    %666 = vmatpush1.msra.mxu0 %v175
    %667 = vmatprep.subr.mxu0 0.0
    %668 = vmatpush1.msra.mxu0 %v176
    %669 = vmatprep.subr.mxu0 0.0
    %670 = vmatpush1.msra.mxu0 %v177
    %671 = vmatprep.subr.mxu0 0.0
    %672 = vmatpush1.msra.mxu0 %v178
    %673 = vmatprep.subr.mxu0 0.0
    %674 = vmatpush1.msra.mxu0 %v179
    %675 = vmatprep.subr.mxu0 0.0
    %676 = vmatpush1.msra.mxu0 0.0
    %677 = vmatprep.subr.mxu0 0.0
    %678 = vmatpush1.msra.mxu0 0.0
    %679 = vmatprep.subr.mxu0 0.0
    %680 = vmatpush1.msra.mxu0 0.0
    %681 = vmatprep.subr.mxu0 0.0
    %682 = vmatpush1.msra.mxu0 0.0
    %683 = vmatprep.subr.mxu0 0.0
    %684 = vmatpush1.msra.mxu0 0.0
    %685 = vmatprep.subr.mxu0 0.0
    %686 = vmatpush1.msra.mxu0 0.0
    %687 = vmatprep.subr.mxu0 0.0
    %688 = vmatpush1.msra.mxu0 0.0
    %689 = vmatprep.subr.mxu0 0.0
    %690 = vmatpush1.msra.mxu0 0.0
    %691 = vmatprep.subr.mxu0 0.0
    %692 = vmatpush1.msra.mxu0 0.0
    %693 = vmatprep.subr.mxu0 0.0
    %694 = vmatpush1.msra.mxu0 0.0
    %695 = vmatprep.subr.mxu0 0.0
    %696 = vmatpush1.msra.mxu0 0.0
    %697 = vmatprep.subr.mxu0 0.0
    %698 = vmatpush1.msra.mxu0 0.0
    %699 = vmatprep.subr.mxu0 0.0
    %700 = vmatpush1.msra.mxu0 0.0
    %701 = vmatprep.subr.mxu0 0.0
    %702 = vmatpush1.msra.mxu0 0.0
    %703 = vmatprep.subr.mxu0 0.0
    %704 = vmatpush1.msra.mxu0 0.0
    %705 = vmatprep.subr.mxu0 0.0
    %706 = vmatpush1.msra.mxu0 0.0
    %707 = vmatprep.mubr.f32.mxu0 0.0
    %708 = vmatmul.mubr.f32.gmra.mrb[0].mxu0 %v641
    %v709 = vpop.f32.mrb[0].mxu0
    %v710 = vadd.f32 0.0, %v709
    %v711 = vpop.f32.mrb[0].mxu0
    %712 = vdwg.mxu0
    %v714 = vrot.slane %v710, 2
    %v716 = vadd.f32 %v161, %v714
    %v717 = vtanh.pop %v716
    %v719 = vrot.slane %v717, 6
    %721 = vmatprep.subr.mxu0 0.0
    %722 = vmatpush1.msra.mxu0 %v164
    %723 = vmatprep.subr.mxu0 0.0
    %724 = vmatpush1.msra.mxu0 %v165
    %725 = vmatprep.subr.mxu0 0.0
    %726 = vmatpush1.msra.mxu0 %v166
    %727 = vmatprep.subr.mxu0 0.0
    %728 = vmatpush1.msra.mxu0 %v167
    %729 = vmatprep.subr.mxu0 0.0
    %730 = vmatpush1.msra.mxu0 %v168
    %731 = vmatprep.subr.mxu0 0.0
    %732 = vmatpush1.msra.mxu0 %v169
    %733 = vmatprep.subr.mxu0 0.0
    %734 = vmatpush1.msra.mxu0 %v170
    %735 = vmatprep.subr.mxu0 0.0
    %736 = vmatpush1.msra.mxu0 %v171
    %737 = vmatprep.subr.mxu0 0.0
    %738 = vmatpush1.msra.mxu0 %v172
    %739 = vmatprep.subr.mxu0 0.0
    %740 = vmatpush1.msra.mxu0 %v173
    %741 = vmatprep.subr.mxu0 0.0
    %742 = vmatpush1.msra.mxu0 %v174
    %743 = vmatprep.subr.mxu0 0.0
    %744 = vmatpush1.msra.mxu0 %v175
    %745 = vmatprep.subr.mxu0 0.0
    %746 = vmatpush1.msra.mxu0 %v176
    %747 = vmatprep.subr.mxu0 0.0
    %748 = vmatpush1.msra.mxu0 %v177
    %749 = vmatprep.subr.mxu0 0.0
    %750 = vmatpush1.msra.mxu0 %v178
    %751 = vmatprep.subr.mxu0 0.0
    %752 = vmatpush1.msra.mxu0 %v179
    %753 = vmatprep.subr.mxu0 0.0
    %754 = vmatpush1.msra.mxu0 0.0
    %755 = vmatprep.subr.mxu0 0.0
    %756 = vmatpush1.msra.mxu0 0.0
    %757 = vmatprep.subr.mxu0 0.0
    %758 = vmatpush1.msra.mxu0 0.0
    %759 = vmatprep.subr.mxu0 0.0
    %760 = vmatpush1.msra.mxu0 0.0
    %761 = vmatprep.subr.mxu0 0.0
    %762 = vmatpush1.msra.mxu0 0.0
    %763 = vmatprep.subr.mxu0 0.0
    %764 = vmatpush1.msra.mxu0 0.0
    %765 = vmatprep.subr.mxu0 0.0
    %766 = vmatpush1.msra.mxu0 0.0
    %767 = vmatprep.subr.mxu0 0.0
    %768 = vmatpush1.msra.mxu0 0.0
    %769 = vmatprep.subr.mxu0 0.0
    %770 = vmatpush1.msra.mxu0 0.0
    %771 = vmatprep.subr.mxu0 0.0
    %772 = vmatpush1.msra.mxu0 0.0
    %773 = vmatprep.subr.mxu0 0.0
    %774 = vmatpush1.msra.mxu0 0.0
    %775 = vmatprep.subr.mxu0 0.0
    %776 = vmatpush1.msra.mxu0 0.0
    %777 = vmatprep.subr.mxu0 0.0
    %778 = vmatpush1.msra.mxu0 0.0
    %779 = vmatprep.subr.mxu0 0.0
    %780 = vmatpush1.msra.mxu0 0.0
    %781 = vmatprep.subr.mxu0 0.0
    %782 = vmatpush1.msra.mxu0 0.0
    %783 = vmatprep.subr.mxu0 0.0
    %784 = vmatpush1.msra.mxu0 0.0
    %785 = vmatprep.mubr.f32.mxu0 0.0
    %786 = vmatmul.mubr.f32.gmra.mrb[0].mxu0 %v719
    %v787 = vpop.f32.mrb[0].mxu0
    %v788 = vadd.f32 0.0, %v787
    %v789 = vpop.f32.mrb[0].mxu0
    %790 = vdwg.mxu0
    %v792 = vrot.slane %v788, 1
    %v794 = vadd.f32 %v161, %v792
    %v795 = vtanh.pop %v794
    %796 = vst [vmem:[%s8 - $0x7] sm:$0x80] %v795
    %v797 = vld [vmem:[#allocation7] sm:$0xff]
    %v798 = vld [vmem:[#allocation7 + $0x8] sm:$0xff]
    %v799 = vld [vmem:[#allocation7 + $0x10] sm:$0xff]
    %v800 = vld [vmem:[#allocation7 + $0x18] sm:$0xff]
    %v801 = vld [vmem:[#allocation7 + $0x20] sm:$0xff]
    %v802 = vld [vmem:[#allocation7 + $0x28] sm:$0xff]
    %v803 = vld [vmem:[#allocation7 + $0x30] sm:$0xff]
    %v804 = vld [vmem:[#allocation7 + $0x38] sm:$0xff]
    %v805 = vld [vmem:[#allocation7 + $0x40] sm:$0xff]
    %v806 = vld [vmem:[#allocation7 + $0x48] sm:$0xff]
    %v807 = vld [vmem:[#allocation7 + $0x50] sm:$0xff]
    %v808 = vld [vmem:[#allocation7 + $0x58] sm:$0xff]
    %v809 = vld [vmem:[#allocation7 + $0x60] sm:$0xff]
    %v810 = vld [vmem:[#allocation7 + $0x68] sm:$0xff]
    %v811 = vld [vmem:[#allocation7 + $0x70] sm:$0xff]
    %v812 = vld [vmem:[#allocation7 + $0x78] sm:$0xff]
    %v813 = vld [vmem:[%s6] sm:$0x1]
    %v815 = vrot.slane %v795, 7
    %817 = vmatprep.subr.mxu0 0.0
    %818 = vmatpush1.msra.mxu0 %v797
    %819 = vmatprep.subr.mxu0 0.0
    %820 = vmatpush1.msra.mxu0 %v798
    %821 = vmatprep.subr.mxu0 0.0
    %822 = vmatpush1.msra.mxu0 %v799
    %823 = vmatprep.subr.mxu0 0.0
    %824 = vmatpush1.msra.mxu0 %v800
    %825 = vmatprep.subr.mxu0 0.0
    %826 = vmatpush1.msra.mxu0 %v801
    %827 = vmatprep.subr.mxu0 0.0
    %828 = vmatpush1.msra.mxu0 %v802
    %829 = vmatprep.subr.mxu0 0.0
    %830 = vmatpush1.msra.mxu0 %v803
    %831 = vmatprep.subr.mxu0 0.0
    %832 = vmatpush1.msra.mxu0 %v804
    %833 = vmatprep.subr.mxu0 0.0
    %834 = vmatpush1.msra.mxu0 %v805
    %835 = vmatprep.subr.mxu0 0.0
    %836 = vmatpush1.msra.mxu0 %v806
    %837 = vmatprep.subr.mxu0 0.0
    %838 = vmatpush1.msra.mxu0 %v807
    %839 = vmatprep.subr.mxu0 0.0
    %840 = vmatpush1.msra.mxu0 %v808
    %841 = vmatprep.subr.mxu0 0.0
    %842 = vmatpush1.msra.mxu0 %v809
    %843 = vmatprep.subr.mxu0 0.0
    %844 = vmatpush1.msra.mxu0 %v810
    %845 = vmatprep.subr.mxu0 0.0
    %846 = vmatpush1.msra.mxu0 %v811
    %847 = vmatprep.subr.mxu0 0.0
    %848 = vmatpush1.msra.mxu0 %v812
    %849 = vmatprep.subr.mxu0 0.0
    %850 = vmatpush1.msra.mxu0 0.0
    %851 = vmatprep.subr.mxu0 0.0
    %852 = vmatpush1.msra.mxu0 0.0
    %853 = vmatprep.subr.mxu0 0.0
    %854 = vmatpush1.msra.mxu0 0.0
    %855 = vmatprep.subr.mxu0 0.0
    %856 = vmatpush1.msra.mxu0 0.0
    %857 = vmatprep.subr.mxu0 0.0
    %858 = vmatpush1.msra.mxu0 0.0
    %859 = vmatprep.subr.mxu0 0.0
    %860 = vmatpush1.msra.mxu0 0.0
    %861 = vmatprep.subr.mxu0 0.0
    %862 = vmatpush1.msra.mxu0 0.0
    %863 = vmatprep.subr.mxu0 0.0
    %864 = vmatpush1.msra.mxu0 0.0
    %865 = vmatprep.subr.mxu0 0.0
    %866 = vmatpush1.msra.mxu0 0.0
    %867 = vmatprep.subr.mxu0 0.0
    %868 = vmatpush1.msra.mxu0 0.0
    %869 = vmatprep.subr.mxu0 0.0
    %870 = vmatpush1.msra.mxu0 0.0
    %871 = vmatprep.subr.mxu0 0.0
    %872 = vmatpush1.msra.mxu0 0.0
    %873 = vmatprep.subr.mxu0 0.0
    %874 = vmatpush1.msra.mxu0 0.0
    %875 = vmatprep.subr.mxu0 0.0
    %876 = vmatpush1.msra.mxu0 0.0
    %877 = vmatprep.subr.mxu0 0.0
    %878 = vmatpush1.msra.mxu0 0.0
    %879 = vmatprep.subr.mxu0 0.0
    %880 = vmatpush1.msra.mxu0 0.0
    %881 = vmatprep.mubr.f32.mxu0 0.0
    %882 = vmatmul.mubr.f32.gmra.mrb[0].mxu0 %v815
    %v883 = vpop.f32.mrb[0].mxu0
    %v884 = vadd.f32 %v813, %v883
    %v885 = vpop.f32.mrb[0].mxu0
    %886 = vdwg.mxu0
    %v887 = vsel %vm90, %v884, -inf
    %888 = vmax.xlane.f32.xlu0 %v887
    %v889 = vpop.xlane.xlu0 %888
    %v890 = vsub.f32 %v884, %v889
    %v891 = vmul.f32 %v890, 1.442695
    %v892 = vpow.pop %v891
    %v893 = vsel %vm90, %v892, 0.0
    %894 = vadd.xlane.f32.xlu0 %v893
    %v895 = vpop.xlane.xlu0 %894
    %v896 = vlog2.pop %v895
    %v897 = vmul.f32 %v896, 0.6931472
    %v898 = vsub.f32 %v890, %v897
    %899 = vst [vmem:[#allocation8] sm:$0x1] %v898
    // Predicated region
    $region42: #{_myrnn_call.1} parent=1 // pred_check
      _
    $region43: #{_myrnn_call.1} parent=1 // pred_check_branch
      %901 = sbr.rel (0) target = $region45
    $region44: #{_myrnn_call.1} parent=1 // pred_region
      %s903 = ssub.s32 16, 16
      %904 = vsyncadd [#allocation4], %s903
      %s906 = sshll.u32 [#allocation8], 4
      %s907 = int_to_ptr.vmem [resolvable:$true] %s906
      %909 = dma.vmem_to_hbm [thread:$0]  %s907, 16, %s7, [#allocation4]
    $region45: #{_myrnn_call.1} parent=1 // pred_fallthru
      _
    // Predicated region
    $region46: #{_myrnn_call.1} parent=1 // pred_check
      _
    $region47: #{_myrnn_call.1} parent=1 // pred_check_branch
      %911 = sbr.rel (0) target = $region49
    $region48: #{_myrnn_call.1} parent=1 // pred_region
      _
    $region49: #{_myrnn_call.1} parent=1 // pred_fallthru
      _
    // Predicated region
    $region50: #{_myrnn_call.1} parent=1 // pred_check
      _
    $region51: #{_myrnn_call.1} parent=1 // pred_check_branch
      %913 = sbr.rel (0) target = $region53
    $region52: #{_myrnn_call.1} parent=1 // pred_region
      %914 = dma.done [#allocation4], 16
    $region53: #{_myrnn_call.1} parent=1 // pred_fallthru
      _
    // Predicated region
    $region54: #{_myrnn_call.1} parent=1 // pred_check
      _
    $region55: #{_myrnn_call.1} parent=1 // pred_check_branch
      %916 = sbr.rel (0) target = $region57
    $region56: #{_myrnn_call.1} parent=1 // pred_region
      _
    $region57: #{_myrnn_call.1} parent=1 // pred_fallthru
      _
    %917 = vsyncpa [#allocation3], 1
    %918 = vsyncpa [#allocation6], 1
    %919 = vsyncpa [#allocation4], 1

</llo_original>
